<compile_context>
chip_gen: v5e
topology: v5e:2x2
jax: 0.10.0
libtpu: 0.0.40
codegen_flags: <defaults>
</compile_context>

<pallas_src>
import functools

import jax
import jax.numpy as jnp
from jax import lax
from jax.experimental import pallas as pl
from jax.experimental.pallas import tpu as pltpu

LANES = 128
VMEM_LIMIT_BYTES = 32 * 1024 * 1024   # safe on v5e/v6e (128 MiB) and v7x (64 MiB)


def _tpu_tuning():
    """Per-generation (block_rows, num_cores) for this HBM-bound reduction."""
    kind = ""
    try:
        kind = jax.devices()[0].device_kind.lower()
    except Exception:
        pass
    if "v7" in kind:
        return 8192, 2        # 4 MiB/input/block; split the grid over 2 TCs
    if "v6" in kind:
        return 8192, 1        # 4 MiB/input/block; single TensorCore
    return 4096, 1            # v5e / unknown: 2 MiB/input/block, single TC


def _dice_kernel(x_ref, t_ref, out_ref, *, blocks_per_core, full_blocks,
                 tail_rows):
    """Accumulates per-lane [sum(s*t); sum(s); sum(t)] into out_ref[0:3]."""
    c = pl.program_id(0)      # parallel (core) axis
    j = pl.program_id(1)      # sequential reduction axis

    @pl.when(j == 0)
    def _():
        out_ref[...] = jnp.zeros_like(out_ref)

    gb = c * blocks_per_core + j          # global block index (small int32)

    def accumulate(row_mask):
        x = x_ref[...].astype(jnp.float32)
        t = t_ref[...].astype(jnp.float32)
        s = jax.nn.sigmoid(x)
        if row_mask is not None:
            # where (not multiply) so garbage/NaN in the padded rows of a
            # partial block is dropped cleanly.
            s = jnp.where(row_mask, s, 0.0)
            t = jnp.where(row_mask, t, 0.0)
        out_ref[0:1, :] += jnp.sum(s * t, axis=0, keepdims=True)
        out_ref[1:2, :] += jnp.sum(s, axis=0, keepdims=True)
        out_ref[2:3, :] += jnp.sum(t, axis=0, keepdims=True)

    @pl.when(gb < full_blocks)
    def _():
        accumulate(None)                  # fully valid block: no mask at all

    if tail_rows:                         # static: only traced if a ragged
        @pl.when(gb == full_blocks)       # last block actually exists
        def _():
            rows = x_ref.shape[0]
            row_idx = lax.broadcasted_iota(jnp.int32, (rows, LANES), 0)
            accumulate(row_idx < tail_rows)
    # gb > full_blocks only happens for clamped duplicate blocks produced by
    # an uneven core split; they contribute nothing and are skipped entirely.


def dice_loss(inputs, targets, smooth=1.0):
    """Pallas TPU implementation of DiceLoss.forward (returns a scalar).

    Inputs may be any float/int dtype (bf16 logits / bf16 or int8 targets cut
    HBM traffic); the kernel widens to f32 for accumulation.
    """
    x = jnp.ravel(inputs)                 # free reshape of contiguous data
    t = jnp.ravel(targets)
    n = x.shape[0]

    n_body = (n // LANES) * LANES
    rem = n - n_body

    tail_i = tail_s = tail_t = jnp.float32(0.0)
    if rem:
        # Rare non-128-multiple case: reduce the <128-element tail in plain
        # JAX and feed the kernel only the 128-aligned body.
        xt = x[n_body:].astype(jnp.float32)
        tt = t[n_body:].astype(jnp.float32)
        st = jax.nn.sigmoid(xt)
        tail_i = jnp.sum(st * tt)
        tail_s = jnp.sum(st)
        tail_t = jnp.sum(tt)
        x = x[:n_body]
        t = t[:n_body]

    if n_body == 0:
        intersection, s_sum, t_sum = tail_i, tail_s, tail_t
    else:
        x2 = x.reshape(-1, LANES)         # zero-copy: lane-dense layout
        t2 = t.reshape(-1, LANES)
        rows = x2.shape[0]

        tuned_rows, tuned_cores = _tpu_tuning()
        # One exact full-dim block for small inputs (always layout-legal),
        # otherwise big fixed blocks with a masked partial last block.
        block_rows = rows if rows <= tuned_rows else tuned_rows
        num_blocks = pl.cdiv(rows, block_rows)
        full_blocks = rows // block_rows          # static
        tail_rows = rows % block_rows             # static
        num_cores = min(tuned_cores, num_blocks)
        blocks_per_core = pl.cdiv(num_blocks, num_cores)

        def in_map(c, j):
            # Clamp so an uneven core split never reads past the array; the
            # clamped duplicate block is skipped inside the kernel.
            return (jnp.minimum(c * blocks_per_core + j, num_blocks - 1), 0)

        in_spec = pl.BlockSpec((block_rows, LANES), in_map)
        out_spec = pl.BlockSpec((None, 8, LANES), lambda c, j: (c, 0, 0))

        partials = pl.pallas_call(
            functools.partial(_dice_kernel,
                              blocks_per_core=blocks_per_core,
                              full_blocks=full_blocks,
                              tail_rows=tail_rows),
            out_shape=jax.ShapeDtypeStruct((num_cores, 8, LANES), jnp.float32),
            grid_spec=pltpu.PrefetchScalarGridSpec(
                num_scalar_prefetch=0,
                grid=(num_cores, blocks_per_core),
                in_specs=[in_spec, in_spec],
                out_specs=out_spec,
            ),
            compiler_params=pltpu.CompilerParams(
                dimension_semantics=("parallel", "arbitrary"),
                vmem_limit_bytes=VMEM_LIMIT_BYTES),
        )(x2, t2)

        # Tiny final combine (a few hundred floats) in plain JAX.
        intersection = jnp.sum(partials[:, 0, :]) + tail_i
        s_sum = jnp.sum(partials[:, 1, :]) + tail_s
        t_sum = jnp.sum(partials[:, 2, :]) + tail_t

    dice = (2.0 * intersection + smooth) / (s_sum + t_sum + smooth)
    return 1.0 - dice


def _reference(inputs, targets, smooth=1.0):
    x = jax.nn.sigmoid(inputs.astype(jnp.float32)).ravel()
    t = targets.astype(jnp.float32).ravel()
    inter = jnp.sum(x * t)
    dice = (2.0 * inter + smooth) / (jnp.sum(x) + jnp.sum(t) + smooth)
    return 1.0 - dice


if __name__ == "__main__":
    key = jax.random.PRNGKey(0)
    k1, k2 = jax.random.split(key)
    # logits + binary targets, NCHW like the segmentation model feeds the loss
    x = jax.random.normal(k1, (2, 4, 16, 16), dtype=jnp.float32)
    t = (jax.random.uniform(k2, (2, 4, 16, 16)) > 0.5).astype(jnp.float32)

    loss = dice_loss(x, t, smooth=1.0)
    loss = jax.block_until_ready(loss)

    ref = _reference(x, t, smooth=1.0)
    assert jnp.allclose(loss, ref, atol=1e-5, rtol=1e-5), (loss, ref)
    print("KERNEL_OK")
</pallas_src>

<mosaic_0001>
module attributes {stable_mosaic.version = 11 : i64} {
  func.func @_dice_kernel(%arg0: i32, %arg1: i32, %arg2: memref<16x128xf32, #tpu.memory_space<vmem>>, %arg3: memref<16x128xf32, #tpu.memory_space<vmem>>, %arg4: memref<1x8x128xf32, #tpu.memory_space<vmem>>) attributes {dimension_semantics = [#tpu.dimension_semantics<parallel>, #tpu.dimension_semantics<arbitrary>], iteration_bounds = array<i64: 1, 1>, scalar_prefetch = 0 : i64, scratch_operands = 0 : i64, tpu.core_type = #tpu.core_type<tc>, window_params = [{transform_indices = @transform_0, window_bounds = array<i64: 16, 128>}, {transform_indices = @transform_1, window_bounds = array<i64: 16, 128>}, {transform_indices = @transform_2, window_bounds = array<i64: 1, 8, 128>}]} {
    %c0_i32 = arith.constant 0 : i32
    %0 = arith.cmpi eq, %arg1, %c0_i32 : i32
    %1 = arith.extui %0 : i1 to i32
    %c0_i32_0 = arith.constant 0 : i32
    %2 = arith.cmpi ne, %1, %c0_i32_0 : i32
    scf.if %2 {
      %cst = arith.constant 0.000000e+00 : f32
      %8 = vector.broadcast %cst : f32 to vector<8x128xf32>
      %c0 = arith.constant 0 : index
      %c0_3 = arith.constant 0 : index
      %c0_4 = arith.constant 0 : index
      %9 = vector.load %arg4[%c0, %c0_3, %c0_4] : memref<1x8x128xf32, #tpu.memory_space<vmem>>, vector<1x8x128xf32>
      %10 = vector.shape_cast %9 : vector<1x8x128xf32> to vector<8x128xf32>
      %11 = vector.shape_cast %8 : vector<8x128xf32> to vector<1x8x128xf32>
      tpu.vector_store %arg4[%c0, %c0_3, %c0_4], %11 {strides = array<i32>} : memref<1x8x128xf32, #tpu.memory_space<vmem>>, vector<1x8x128xf32>,
    } else {
    }
    %c1_i32 = arith.constant 1 : i32
    %3 = arith.muli %arg0, %c1_i32 : i32
    %4 = arith.addi %3, %arg1 : i32
    %c1_i32_1 = arith.constant 1 : i32
    %5 = arith.cmpi slt, %4, %c1_i32_1 : i32
    %6 = arith.extui %5 : i1 to i32
    %c0_i32_2 = arith.constant 0 : i32
    %7 = arith.cmpi ne, %6, %c0_i32_2 : i32
    scf.if %7 {
      %c0 = arith.constant 0 : index
      %c0_3 = arith.constant 0 : index
      %8 = vector.load %arg2[%c0, %c0_3] : memref<16x128xf32, #tpu.memory_space<vmem>>, vector<16x128xf32>
      %c0_4 = arith.constant 0 : index
      %c0_5 = arith.constant 0 : index
      %9 = vector.load %arg3[%c0_4, %c0_5] : memref<16x128xf32, #tpu.memory_space<vmem>>, vector<16x128xf32>
      %10 = arith.negf %8 : vector<16x128xf32>
      %11 = math.exp %10 : vector<16x128xf32>
      %cst = arith.constant 1.000000e+00 : f32
      %12 = vector.broadcast %cst : f32 to vector<16x128xf32>
      %13 = arith.addf %12, %11 : vector<16x128xf32>
      %14 = arith.divf %12, %13 : vector<16x128xf32>
      %c0_6 = arith.constant 0 : index
      %c0_7 = arith.constant 0 : index
      %c0_8 = arith.constant 0 : index
      %15 = vector.load %arg4[%c0_6, %c0_7, %c0_8] : memref<1x8x128xf32, #tpu.memory_space<vmem>>, vector<1x1x128xf32>
      %16 = vector.shape_cast %15 : vector<1x1x128xf32> to vector<1x128xf32>
      %17 = arith.mulf %14, %9 : vector<16x128xf32>
      %cst_9 = arith.constant dense<0.000000e+00> : vector<128xf32>
      %18 = vector.multi_reduction <add>, %17, %cst_9 [0] : vector<16x128xf32> to vector<128xf32>
      %19 = vector.shape_cast %18 : vector<128xf32> to vector<1x128xf32>
      %20 = arith.addf %16, %19 : vector<1x128xf32>
      %c0_10 = arith.constant 0 : index
      %c0_11 = arith.constant 0 : index
      %c0_12 = arith.constant 0 : index
      %21 = vector.load %arg4[%c0_10, %c0_11, %c0_12] : memref<1x8x128xf32, #tpu.memory_space<vmem>>, vector<1x1x128xf32>
      %22 = vector.shape_cast %21 : vector<1x1x128xf32> to vector<1x128xf32>
      %23 = vector.shape_cast %20 : vector<1x128xf32> to vector<1x1x128xf32>
      tpu.vector_store %arg4[%c0_10, %c0_11, %c0_12], %23 {strides = array<i32>} : memref<1x8x128xf32, #tpu.memory_space<vmem>>, vector<1x1x128xf32>,
      %c0_13 = arith.constant 0 : index
      %c1 = arith.constant 1 : index
      %c0_14 = arith.constant 0 : index
      %24 = vector.load %arg4[%c0_13, %c1, %c0_14] : memref<1x8x128xf32, #tpu.memory_space<vmem>>, vector<1x1x128xf32>
      %25 = vector.shape_cast %24 : vector<1x1x128xf32> to vector<1x128xf32>
      %cst_15 = arith.constant dense<0.000000e+00> : vector<128xf32>
      %26 = vector.multi_reduction <add>, %14, %cst_15 [0] : vector<16x128xf32> to vector<128xf32>
      %27 = vector.shape_cast %26 : vector<128xf32> to vector<1x128xf32>
      %28 = arith.addf %25, %27 : vector<1x128xf32>
      %c0_16 = arith.constant 0 : index
      %c1_17 = arith.constant 1 : index
      %c0_18 = arith.constant 0 : index
      %29 = vector.load %arg4[%c0_16, %c1_17, %c0_18] : memref<1x8x128xf32, #tpu.memory_space<vmem>>, vector<1x1x128xf32>
      %30 = vector.shape_cast %29 : vector<1x1x128xf32> to vector<1x128xf32>
      %31 = vector.shape_cast %28 : vector<1x128xf32> to vector<1x1x128xf32>
      tpu.vector_store %arg4[%c0_16, %c1_17, %c0_18], %31 {strides = array<i32>} : memref<1x8x128xf32, #tpu.memory_space<vmem>>, vector<1x1x128xf32>,
      %c0_19 = arith.constant 0 : index
      %c2 = arith.constant 2 : index
      %c0_20 = arith.constant 0 : index
      %32 = vector.load %arg4[%c0_19, %c2, %c0_20] : memref<1x8x128xf32, #tpu.memory_space<vmem>>, vector<1x1x128xf32>
      %33 = vector.shape_cast %32 : vector<1x1x128xf32> to vector<1x128xf32>
      %cst_21 = arith.constant dense<0.000000e+00> : vector<128xf32>
      %34 = vector.multi_reduction <add>, %9, %cst_21 [0] : vector<16x128xf32> to vector<128xf32>
      %35 = vector.shape_cast %34 : vector<128xf32> to vector<1x128xf32>
      %36 = arith.addf %33, %35 : vector<1x128xf32>
      %c0_22 = arith.constant 0 : index
      %c2_23 = arith.constant 2 : index
      %c0_24 = arith.constant 0 : index
      %37 = vector.load %arg4[%c0_22, %c2_23, %c0_24] : memref<1x8x128xf32, #tpu.memory_space<vmem>>, vector<1x1x128xf32>
      %38 = vector.shape_cast %37 : vector<1x1x128xf32> to vector<1x128xf32>
      %39 = vector.shape_cast %36 : vector<1x128xf32> to vector<1x1x128xf32>
      tpu.vector_store %arg4[%c0_22, %c2_23, %c0_24], %39 {strides = array<i32>} : memref<1x8x128xf32, #tpu.memory_space<vmem>>, vector<1x1x128xf32>,
    } else {
    }
    return
  }
  func.func @transform_0(%arg0: i32, %arg1: i32) -> (i32, i32) {
    %c1_i32 = arith.constant 1 : i32
    %0 = arith.muli %arg0, %c1_i32 : i32
    %1 = arith.addi %0, %arg1 : i32
    %c0_i32 = arith.constant 0 : i32
    %2 = arith.minsi %1, %c0_i32 : i32
    %c0_i32_0 = arith.constant 0 : i32
    %c0_i32_1 = arith.constant 0 : i32
    return %2, %c0_i32_0 : i32, i32
  }
  func.func @transform_1(%arg0: i32, %arg1: i32) -> (i32, i32) {
    %c1_i32 = arith.constant 1 : i32
    %0 = arith.muli %arg0, %c1_i32 : i32
    %1 = arith.addi %0, %arg1 : i32
    %c0_i32 = arith.constant 0 : i32
    %2 = arith.minsi %1, %c0_i32 : i32
    %c0_i32_0 = arith.constant 0 : i32
    %c0_i32_1 = arith.constant 0 : i32
    return %2, %c0_i32_0 : i32, i32
  }
  func.func @transform_2(%arg0: i32, %arg1: i32) -> (i32, i32, i32) {
    %c0_i32 = arith.constant 0 : i32
    %c0_i32_0 = arith.constant 0 : i32
    %c0_i32_1 = arith.constant 0 : i32
    return %arg0, %c0_i32, %c0_i32_0 : i32, i32, i32
  }
}

</mosaic_0001>

<llo_original>
// kernel: tpu_custom_call.1
$region0: #{tpu_custom_call.1}
  #allocation0 [shape = 'u32[]', space=smem, size = 0x4, offset = 0x4, fixed_abs, tag = 'smem constant byte address 0x4 - core index']
  #allocation1 [shape = 'u32[72,128]{1,0:T(1,128)}', space=vmem, size = 0x9000, scoped, tag = 'internal scratch']
  %s0 = inlined_call_operand.hbm [shape: f32[16,128], index: 0, kind: input, shape index: {}]
  %s1 = inlined_call_operand.hbm [shape: f32[16,128], index: 1, kind: input, shape index: {}]
  %s2 = inlined_call_operand.hbm [shape: f32[1,8,128], index: 2, kind: output, shape index: {}]
  %s3 = sld [smem:[#allocation0]]
  $region34: #{tpu_custom_call.1} parent=0
    _
  %s5 = ssub.s32 1, %s3
  %s6 = scalar_select 0, %s5, %s3
  $region1: #{tpu_custom_call.1} parent=0
    #allocation2 [shape = 'u8[8192]{0}', space=vmem, size = 0x2000, scoped, tag = 'input window, operand 0, single buffered']
    #allocation3 [shape = 's32[1]{0}', space=sflag, size = 0x4, scoped, tag = 'scoped memory for tpu_custom_call.1']
    #allocation4 [shape = 's32[1]{0}', space=sflag, size = 0x4, scoped, tag = 'scoped memory for tpu_custom_call.1']
    #allocation5 [shape = 'u8[8192]{0}', space=vmem, size = 0x2000, scoped, tag = 'input window, operand 1, single buffered']
    #allocation6 [shape = 's32[1]{0}', space=sflag, size = 0x4, scoped, tag = 'scoped memory for tpu_custom_call.1']
    #allocation7 [shape = 'u8[4096]{0}', space=vmem, size = 0x1000, scoped, tag = 'output window, operand 0, single buffered']
    %7 = vsyncpa [#allocation3], 0
    %8 = vsyncpa [#allocation6], 0
    %9 = vsyncpa [#allocation4], 0
    // Predicated region
    $region2: #{tpu_custom_call.1} parent=1 // pred_check
      _
    $region3: #{tpu_custom_call.1} parent=1 // pred_check_branch
      %11 = sbr.rel (0) target = $region5
    $region4: #{tpu_custom_call.1} parent=1 // pred_region
      %s12 = sadd.s32 0, 0
      %p13 = scmp.lt.s32.totalorder %s12, 0
      %s14 = scalar_select %p13, %s12, 0
      %s15 = smul.u32 2, %s14
      %17 = vsyncadd [#allocation3], 0
      %s18 = smul.addr %s15, 8
      %s19 = scalar_lea.hbm %s0, %s18
      %s20 = sshll.u32 %s19, 4
      %s21 = int_to_ptr.hbm [resolvable:$true] %s20
      %s22 = sshll.u32 [#allocation2], 4
      %s23 = int_to_ptr.vmem [resolvable:$true] %s22
      %28 = dma.hbm_to_vmem [thread:$0]  %s21, 256, %s23, [#allocation3], 128, 128, 8
    $region5: #{tpu_custom_call.1} parent=1 // pred_fallthru
      _
    // Predicated region
    $region6: #{tpu_custom_call.1} parent=1 // pred_check
      _
    $region7: #{tpu_custom_call.1} parent=1 // pred_check_branch
      %30 = sbr.rel (0) target = $region9
    $region8: #{tpu_custom_call.1} parent=1 // pred_region
      %s31 = sadd.s32 0, 0
      %p32 = scmp.lt.s32.totalorder %s31, 0
      %s33 = scalar_select %p32, %s31, 0
      %s34 = smul.u32 2, %s33
      %36 = vsyncadd [#allocation6], 0
      %s37 = smul.addr %s34, 8
      %s38 = scalar_lea.hbm %s1, %s37
      %s39 = sshll.u32 %s38, 4
      %s40 = int_to_ptr.hbm [resolvable:$true] %s39
      %s41 = sshll.u32 [#allocation5], 4
      %s42 = int_to_ptr.vmem [resolvable:$true] %s41
      %47 = dma.hbm_to_vmem [thread:$0]  %s40, 256, %s42, [#allocation6], 128, 128, 8
    $region9: #{tpu_custom_call.1} parent=1 // pred_fallthru
      _
    // Predicated region
    $region10: #{tpu_custom_call.1} parent=1 // pred_check
      _
    $region11: #{tpu_custom_call.1} parent=1 // pred_check_branch
      %49 = sbr.rel (0) target = $region13
    $region12: #{tpu_custom_call.1} parent=1 // pred_region
      %51 = dma.done [#allocation3], 256
    $region13: #{tpu_custom_call.1} parent=1 // pred_fallthru
      _
    // Predicated region
    $region14: #{tpu_custom_call.1} parent=1 // pred_check
      _
    $region15: #{tpu_custom_call.1} parent=1 // pred_check_branch
      %53 = sbr.rel (0) target = $region17
    $region16: #{tpu_custom_call.1} parent=1 // pred_region
      %55 = dma.done [#allocation6], 256
    $region17: #{tpu_custom_call.1} parent=1 // pred_fallthru
      _
    %s56 = sadd.s32 0, 0
    %p57 = scmp.lt.s32.totalorder %s56, 0
    %s58 = scalar_select %p57, %s56, 0
    %s59 = smul.u32 2, %s58
    %s60 = sadd.s32 0, 0
    %p61 = scmp.lt.s32.totalorder %s60, 0
    %s62 = scalar_select %p61, %s60, 0
    %s63 = smul.u32 2, %s62
    %p64 = scmp.eq.s32.totalorder 0, 0
    // Predicated region
    $region18: #{tpu_custom_call.1} parent=1 // pred_check
      %p65 = pneg %p64
    $region19: #{tpu_custom_call.1} parent=1 // pred_check_branch
      %67 = sbr.rel (%p65) target = $region21
    $region20: #{tpu_custom_call.1} parent=1 // pred_region
      %68 = vst [vmem:[#allocation7] sm:$0xff] 0.0
    $region21: #{tpu_custom_call.1} parent=1 // pred_fallthru
      _
    %s69 = sadd.s32 0, 0
    %p70 = scmp.lt.s32.totalorder %s69, 1
    // Predicated region
    $region22: #{tpu_custom_call.1} parent=1 // pred_check
      %p71 = pneg %p70
    $region23: #{tpu_custom_call.1} parent=1 // pred_check_branch
      %73 = sbr.rel (%p71) target = $region25
    $region24: #{tpu_custom_call.1} parent=1 // pred_region
      %v74 = vld [vmem:[#allocation2] sm:$0xff]
      %v75 = vld [vmem:[#allocation2 + $0x8] sm:$0xff]
      %v76 = vld [vmem:[#allocation5] sm:$0xff]
      %v77 = vld [vmem:[#allocation5 + $0x8] sm:$0xff]
      %v78 = vxor.u32 %v74, 2147483648
      %v79 = vxor.u32 %v75, 2147483648
      %v80 = vmul.f32 %v78, 1.442695
      %v81 = vpow.pop %v80
      %v82 = vmul.f32 %v79, 1.442695
      %v83 = vpow.pop %v82
      %v84 = vadd.f32 %v81, 1.0
      %v85 = vadd.f32 %v83, 1.0
      %v86 = vrcp.pop %v84
      %v87 = vmul.f32 %v84, %v86
      %v88 = vsub.f32 1.0, %v87
      %v89 = vmul.f32 %v86, %v88
      %v90 = vadd.f32 %v86, %v89
      %vm91 = vweird.f32 %v84
      %vm92 = vweird.f32 %v86
      %vm93 = vmor %vm91, %vm92
      %v94 = vsel %vm93, %v86, %v90
      %v95 = vand.u32 2147483647, %v84
      %vm96 = vcmp.eq.f32.partialorder %v95, 8.507059e+37
      %v97 = vand.u32 %v84, 2147483648
      %v98 = vor.u32 1.1754944e-38, %v97
      %v99 = vsel %vm96, %v98, %v94
      %v100 = vmul.f32 1.0, %v99
      %v101 = vrcp.pop %v85
      %v102 = vmul.f32 %v85, %v101
      %v103 = vsub.f32 1.0, %v102
      %v104 = vmul.f32 %v101, %v103
      %v105 = vadd.f32 %v101, %v104
      %vm106 = vweird.f32 %v85
      %vm107 = vweird.f32 %v101
      %vm108 = vmor %vm106, %vm107
      %v109 = vsel %vm108, %v101, %v105
      %v110 = vand.u32 2147483647, %v85
      %vm111 = vcmp.eq.f32.partialorder %v110, 8.507059e+37
      %v112 = vand.u32 %v85, 2147483648
      %v113 = vor.u32 1.1754944e-38, %v112
      %v114 = vsel %vm111, %v113, %v109
      %v115 = vmul.f32 1.0, %v114
      %v116 = vld [vmem:[#allocation7] sm:$0x1]
      %v117 = vmul.f32 %v100, %v76
      %v118 = vmul.f32 %v115, %v77
      %v119 = vadd.f32 %v117, %v118
      %v120 = vrot.slane %v119, 4
      %v121 = vadd.f32 %v119, %v120
      %v122 = vrot.slane %v121, 2
      %v123 = vadd.f32 %v121, %v122
      %v124 = vrot.slane %v123, 1
      %v125 = vadd.f32 %v123, %v124
      %v126 = vadd.f32 %v116, %v125
      %127 = vst [vmem:[#allocation7] sm:$0x1] %v126
      %v128 = vld [vmem:[#allocation7 + $0x1] sm:$0x1]
      %v129 = vadd.f32 %v100, %v115
      %v130 = vrot.slane %v129, 4
      %v131 = vadd.f32 %v129, %v130
      %v132 = vrot.slane %v131, 2
      %v133 = vadd.f32 %v131, %v132
      %v134 = vrot.slane %v133, 1
      %v135 = vadd.f32 %v133, %v134
      %v136 = vadd.f32 %v128, %v135
      %137 = vst [vmem:[#allocation7 + $0x1] sm:$0x1] %v136
      %v138 = vld [vmem:[#allocation7 + $0x2] sm:$0x1]
      %v139 = vadd.f32 %v76, %v77
      %v140 = vrot.slane %v139, 4
      %v141 = vadd.f32 %v139, %v140
      %v142 = vrot.slane %v141, 2
      %v143 = vadd.f32 %v141, %v142
      %v144 = vrot.slane %v143, 1
      %v145 = vadd.f32 %v143, %v144
      %v146 = vadd.f32 %v138, %v145
      %147 = vst [vmem:[#allocation7 + $0x2] sm:$0x1] %v146
    $region25: #{tpu_custom_call.1} parent=1 // pred_fallthru
      _
    // Predicated region
    $region26: #{tpu_custom_call.1} parent=1 // pred_check
      _
    $region27: #{tpu_custom_call.1} parent=1 // pred_check_branch
      %149 = sbr.rel (0) target = $region29
    $region28: #{tpu_custom_call.1} parent=1 // pred_region
      %151 = vsyncadd [#allocation4], 0
      %s153 = sshll.u32 [#allocation7], 4
      %s154 = int_to_ptr.vmem [resolvable:$true] %s153
      %s155 = sshll.u32 %s2, 4
      %s156 = int_to_ptr.hbm [resolvable:$true] %s155
      %158 = dma.vmem_to_hbm [thread:$0]  %s154, 128, %s156, [#allocation4]
    $region29: #{tpu_custom_call.1} parent=1 // pred_fallthru
      _
    // Predicated region
    $region30: #{tpu_custom_call.1} parent=1 // pred_check
      _
    $region31: #{tpu_custom_call.1} parent=1 // pred_check_branch
      %160 = sbr.rel (0) target = $region33
    $region32: #{tpu_custom_call.1} parent=1 // pred_region
      %162 = dma.done [#allocation4], 128
    $region33: #{tpu_custom_call.1} parent=1 // pred_fallthru
      _
    %163 = vsyncpa [#allocation3], 1
    %164 = vsyncpa [#allocation6], 1
    %165 = vsyncpa [#allocation4], 1

</llo_original>
